<compile_context>
chip_gen: v7x
topology: tpu7x:2x2x1
jax: 0.10.0
libtpu: 0.0.40
codegen_flags: <defaults>
</compile_context>

<pallas_src>
import jax
import jax.numpy as jnp
from jax.experimental import pallas as pl
from jax.experimental.pallas import tpu as pltpu

_INV_LN2 = 1.4426950408889634  # 1 / ln(2), for log2
_EPS = 1e-12                   # F.normalize default eps (clamp_min)


def _similar_loss_kernel(logits_ref, paths_ref, out_ref):
    x = logits_ref[...].astype(jnp.float32)              # [N, C]
    p = paths_ref[...]                                    # [N, P] native dtype (MXU-friendly)

    # ---- entropy of softmax(x, axis=1), in bits, via log-sum-exp ----
    # ent_i = ln(S_i) - (1/S_i) * sum_c e_ic * (x_ic - m_i), all over ln 2
    m = jnp.max(x, axis=1, keepdims=True)                 # [N, 1]
    xm = x - m
    e = jnp.exp(xm)                                       # single [N,C] transcendental
    s = jnp.sum(e, axis=1, keepdims=True)                 # [N, 1]
    w = jnp.sum(e * xm, axis=1, keepdims=True)            # [N, 1]
    ent = (jnp.log(s) - w / s) * _INV_LN2                 # [N, 1], >= 0 (up to fp rounding)

    # ---- similar0 = F.normalize(ent @ ent.T, dim=0) without materializing it ----
    # column j of ent@ent.T is ent * ent[j]; its L2 norm is ||ent|| * |ent[j]|.
    ent_norm = jnp.sqrt(jnp.sum(ent * ent))               # scalar ||ent||
    col_scale = ent / jnp.maximum(ent_norm * jnp.abs(ent), _EPS)   # [N, 1]
    s0n_cols = col_scale.reshape(1, -1)                   # [1, N] per-column factor
    # s0_normalized[i, j] = ent[i] * s0n_cols[j]  (formed lazily in the diff below)

    # ---- similar1 = F.normalize(p @ p.T, dim=0) ----
    s1 = jax.lax.dot_general(p, p, (((1,), (1,)), ((), ())),
                             preferred_element_type=jnp.float32)   # [N, N], symmetric
    # symmetry: column-j norm == row-j norm  -> lane-axis reduction, then relayout [N]->[1,N]
    n1_sq = jnp.sum(s1 * s1, axis=1, keepdims=True)        # [N, 1]
    inv_n1 = jax.lax.rsqrt(jnp.maximum(n1_sq, _EPS * _EPS))  # 1 / max(norm, eps)
    s1n = s1 * inv_n1.reshape(1, -1)                       # per-column scale

    # ---- nn.L1Loss(): mean |similar0 - similar1| ----
    diff = ent * s0n_cols - s1n                            # rank-1 broadcast vs [N,N]
    loss = jnp.mean(jnp.abs(diff))
    out_ref[...] = jnp.reshape(loss, (1, 1))


def similar_loss(logits, paths):
    n = logits.shape[0]
    paths2d = paths.reshape(n, -1)                          # paths.view(N, -1)
    out = pl.pallas_call(
        _similar_loss_kernel,
        out_shape=jax.ShapeDtypeStruct((1, 1), jnp.float32),
        in_specs=[pl.BlockSpec(memory_space=pltpu.MemorySpace.VMEM),
                  pl.BlockSpec(memory_space=pltpu.MemorySpace.VMEM)],
        out_specs=pl.BlockSpec(memory_space=pltpu.MemorySpace.VMEM),
    )(logits, paths2d)                                      # no wrapper-side dtype casts
    return out[0, 0]


def _reference(logits, paths):
    # Pure-JAX reference mirroring the PyTorch forward, for validation.
    n = logits.shape[0]
    probs = jax.nn.softmax(logits.astype(jnp.float32), axis=1)
    ent = -jnp.sum(probs * jnp.log2(probs), axis=1, keepdims=True)
    s0 = ent @ ent.T
    s0 = s0 / jnp.maximum(jnp.linalg.norm(s0, axis=0, keepdims=True), _EPS)
    p = paths.reshape(n, -1).astype(jnp.float32)
    s1 = p @ p.T
    s1 = s1 / jnp.maximum(jnp.linalg.norm(s1, axis=0, keepdims=True), _EPS)
    return jnp.mean(jnp.abs(s0 - s1))


if __name__ == "__main__":
    key = jax.random.PRNGKey(0)
    k1, k2 = jax.random.split(key)
    N, C = 8, 32
    logits = jax.random.normal(k1, (N, C), dtype=jnp.float32)
    paths = jax.random.normal(k2, (N, 4, 4), dtype=jnp.float32)  # viewed as [N, 16]

    loss = similar_loss(logits, paths)
    loss = jax.block_until_ready(loss)

    ref = jax.block_until_ready(_reference(logits, paths))
    assert jnp.allclose(loss, ref, atol=1e-5, rtol=1e-5), (loss, ref)
    print("KERNEL_OK")
</pallas_src>

<mosaic_0001>
module attributes {stable_mosaic.version = 11 : i64} {
  func.func @_similar_loss_kernel(%arg0: memref<8x32xf32, #tpu.memory_space<vmem>>, %arg1: memref<8x16xf32, #tpu.memory_space<vmem>>, %arg2: memref<1x1xf32, #tpu.memory_space<vmem>>) attributes {dimension_semantics = [], scalar_prefetch = 0 : i64, scratch_operands = 0 : i64, tpu.core_type = #tpu.core_type<tc>} {
    %c0 = arith.constant 0 : index
    %c0_0 = arith.constant 0 : index
    %0 = vector.load %arg0[%c0, %c0_0] : memref<8x32xf32, #tpu.memory_space<vmem>>, vector<8x32xf32>
    %c0_1 = arith.constant 0 : index
    %c0_2 = arith.constant 0 : index
    %1 = vector.load %arg1[%c0_1, %c0_2] : memref<8x16xf32, #tpu.memory_space<vmem>>, vector<8x16xf32>
    %cst = arith.constant dense<0xFF800000> : vector<8xf32>
    %2 = vector.multi_reduction <maximumf>, %0, %cst [1] : vector<8x32xf32> to vector<8xf32>
    %3 = vector.shape_cast %2 : vector<8xf32> to vector<8x1xf32>
    %4 = vector.broadcast %3 : vector<8x1xf32> to vector<8x32xf32>
    %5 = arith.subf %0, %4 : vector<8x32xf32>
    %6 = math.exp %5 : vector<8x32xf32>
    %cst_3 = arith.constant dense<0.000000e+00> : vector<8xf32>
    %7 = vector.multi_reduction <add>, %6, %cst_3 [1] : vector<8x32xf32> to vector<8xf32>
    %8 = vector.shape_cast %7 : vector<8xf32> to vector<8x1xf32>
    %9 = arith.mulf %6, %5 : vector<8x32xf32>
    %cst_4 = arith.constant dense<0.000000e+00> : vector<8xf32>
    %10 = vector.multi_reduction <add>, %9, %cst_4 [1] : vector<8x32xf32> to vector<8xf32>
    %11 = vector.shape_cast %10 : vector<8xf32> to vector<8x1xf32>
    %12 = math.log %8 : vector<8x1xf32>
    %13 = arith.divf %11, %8 : vector<8x1xf32>
    %14 = arith.subf %12, %13 : vector<8x1xf32>
    %cst_5 = arith.constant 1.44269502 : f32
    %15 = vector.broadcast %cst_5 : f32 to vector<8x1xf32>
    %16 = arith.mulf %14, %15 : vector<8x1xf32>
    %17 = arith.mulf %16, %16 : vector<8x1xf32>
    %18 = vector.shape_cast %17 : vector<8x1xf32> to vector<1x8x1xf32>
    %cst_6 = arith.constant dense<0.000000e+00> : vector<1xf32>
    %19 = vector.multi_reduction <add>, %18, %cst_6 [1, 2] : vector<1x8x1xf32> to vector<1xf32>
    %20 = vector.shape_cast %19 : vector<1xf32> to vector<1x1x1xf32>
    %21 = vector.extract %20[0, 0, 0] : f32 from vector<1x1x1xf32>
    %22 = math.sqrt %21 : f32
    %23 = math.absf %16 : vector<8x1xf32>
    %24 = vector.broadcast %22 : f32 to vector<8x1xf32>
    %25 = arith.mulf %24, %23 : vector<8x1xf32>
    %cst_7 = arith.constant 9.99999996E-13 : f32
    %26 = vector.broadcast %cst_7 : f32 to vector<8x1xf32>
    %27 = arith.maximumf %25, %26 : vector<8x1xf32>
    %28 = arith.divf %16, %27 : vector<8x1xf32>
    %29 = vector.shape_cast %28 : vector<8x1xf32> to vector<1x8xf32>
    %cst_8 = arith.constant dense<0.000000e+00> : vector<8x8xf32>
    %30 = tpu.matmul %1, %1, %cst_8 {dimension_numbers = #tpu.dot_dimension_numbers<[1], [1], [0], [0], [0, 0, 1, 0], [], []>} : vector<8x16xf32>, vector<8x16xf32>, vector<8x8xf32> -> vector<8x8xf32>
    %31 = arith.mulf %30, %30 : vector<8x8xf32>
    %cst_9 = arith.constant dense<0.000000e+00> : vector<8xf32>
    %32 = vector.multi_reduction <add>, %31, %cst_9 [1] : vector<8x8xf32> to vector<8xf32>
    %33 = vector.shape_cast %32 : vector<8xf32> to vector<8x1xf32>
    %cst_10 = arith.constant 1.000000e-24 : f32
    %34 = vector.broadcast %cst_10 : f32 to vector<8x1xf32>
    %35 = arith.maximumf %33, %34 : vector<8x1xf32>
    %36 = math.rsqrt %35 : vector<8x1xf32>
    %37 = vector.shape_cast %36 : vector<8x1xf32> to vector<1x8xf32>
    %38 = vector.broadcast %37 : vector<1x8xf32> to vector<8x8xf32>
    %39 = arith.mulf %30, %38 : vector<8x8xf32>
    %40 = vector.broadcast %16 : vector<8x1xf32> to vector<8x8xf32>
    %41 = vector.broadcast %29 : vector<1x8xf32> to vector<8x8xf32>
    %42 = arith.mulf %40, %41 : vector<8x8xf32>
    %43 = arith.subf %42, %39 : vector<8x8xf32>
    %44 = math.absf %43 : vector<8x8xf32>
    %45 = vector.shape_cast %44 : vector<8x8xf32> to vector<1x8x8xf32>
    %cst_11 = arith.constant dense<0.000000e+00> : vector<1xf32>
    %46 = vector.multi_reduction <add>, %45, %cst_11 [1, 2] : vector<1x8x8xf32> to vector<1xf32>
    %47 = vector.shape_cast %46 : vector<1xf32> to vector<1x1x1xf32>
    %48 = vector.extract %47[0, 0, 0] : f32 from vector<1x1x1xf32>
    %cst_12 = arith.constant 6.400000e+01 : f32
    %49 = arith.divf %48, %cst_12 : f32
    %50 = vector.broadcast %49 : f32 to vector<1x1xf32>
    %c0_13 = arith.constant 0 : index
    %c0_14 = arith.constant 0 : index
    %51 = vector.load %arg2[%c0_13, %c0_14] : memref<1x1xf32, #tpu.memory_space<vmem>>, vector<1x1xf32>
    tpu.vector_store %arg2[%c0_13, %c0_14], %50 {strides = array<i32>} : memref<1x1xf32, #tpu.memory_space<vmem>>, vector<1x1xf32>,
    return
  }
}

</mosaic_0001>

<llo_original>
// kernel: tpu_custom_call.1
$region0: #{tpu_custom_call.1}
  #allocation0 [shape = 'u32[]', space=smem, size = 0x4, offset = 0x4, fixed_abs, tag = 'smem constant byte address 0x4 - core index']
  #allocation1 [shape = 'u32[144,128]{1,0:T(1,128)}', space=vmem, size = 0x12000, scoped, tag = 'internal scratch']
  %s0 = inlined_call_operand.hbm [shape: f32[8,32], index: 0, kind: input, shape index: {}]
  %s1 = inlined_call_operand.hbm [shape: f32[8,16], index: 1, kind: input, shape index: {}]
  %s2 = inlined_call_operand.hbm [shape: f32[1,1], index: 2, kind: output, shape index: {}]
  %s3 = sld [smem:[#allocation0]]
  $region26: #{tpu_custom_call.1} parent=0
    _
  %s5 = ssub.s32 1, %s3
  %s6 = scalar_select 0, %s5, %s3
  $region1: #{tpu_custom_call.1} parent=0
    #allocation2 [shape = 'u8[4096]{0}', space=vmem, size = 0x1000, scoped, tag = 'input window, operand 0, single buffered']
    #allocation3 [shape = 's32[1]{0}', space=sflag, size = 0x4, scoped, tag = 'scoped memory for tpu_custom_call.1']
    #allocation4 [shape = 's32[1]{0}', space=sflag, size = 0x4, scoped, tag = 'scoped memory for tpu_custom_call.1']
    #allocation5 [shape = 'u8[4096]{0}', space=vmem, size = 0x1000, scoped, tag = 'input window, operand 1, single buffered']
    #allocation6 [shape = 's32[1]{0}', space=sflag, size = 0x4, scoped, tag = 'scoped memory for tpu_custom_call.1']
    #allocation7 [shape = 'u8[512]{0}', space=vmem, size = 0x400, scoped, tag = 'output window, operand 0, single buffered']
    %7 = vsyncpa [#allocation3], 0
    %8 = vsyncpa [#allocation6], 0
    %9 = vsyncpa [#allocation4], 0
    // Predicated region
    $region2: #{tpu_custom_call.1} parent=1 // pred_check
      _
    $region3: #{tpu_custom_call.1} parent=1 // pred_check_branch
      %11 = sbr.rel (0) target = $region5
    $region4: #{tpu_custom_call.1} parent=1 // pred_region
      %s13 = ssub.s32 128, 128
      %14 = vsyncadd [#allocation3], %s13
      %s16 = sshll.u32 [#allocation2], 4
      %s17 = int_to_ptr.vmem [resolvable:$true] %s16
      %19 = dma.hbm_to_vmem [thread:$0]  %s0, 128, %s17, [#allocation3]
    $region5: #{tpu_custom_call.1} parent=1 // pred_fallthru
      _
    // Predicated region
    $region6: #{tpu_custom_call.1} parent=1 // pred_check
      _
    $region7: #{tpu_custom_call.1} parent=1 // pred_check_branch
      %21 = sbr.rel (0) target = $region9
    $region8: #{tpu_custom_call.1} parent=1 // pred_region
      %s23 = ssub.s32 128, 128
      %24 = vsyncadd [#allocation6], %s23
      %s26 = sshll.u32 [#allocation5], 4
      %s27 = int_to_ptr.vmem [resolvable:$true] %s26
      %29 = dma.hbm_to_vmem [thread:$0]  %s1, 128, %s27, [#allocation6]
    $region9: #{tpu_custom_call.1} parent=1 // pred_fallthru
      _
    // Predicated region
    $region10: #{tpu_custom_call.1} parent=1 // pred_check
      _
    $region11: #{tpu_custom_call.1} parent=1 // pred_check_branch
      %31 = sbr.rel (0) target = $region13
    $region12: #{tpu_custom_call.1} parent=1 // pred_region
      %32 = dma.done [#allocation3], 128
    $region13: #{tpu_custom_call.1} parent=1 // pred_fallthru
      _
    // Predicated region
    $region14: #{tpu_custom_call.1} parent=1 // pred_check
      _
    $region15: #{tpu_custom_call.1} parent=1 // pred_check_branch
      %34 = sbr.rel (0) target = $region17
    $region16: #{tpu_custom_call.1} parent=1 // pred_region
      %35 = dma.done [#allocation6], 128
    $region17: #{tpu_custom_call.1} parent=1 // pred_fallthru
      _
    %v36 = vld [vmem:[#allocation2] sm:$0xff]
    %v37 = vld [vmem:[#allocation5] sm:$0xff]
    %vm38 = vcmask 261120
    %v39 = vsel %vm38, %v36, -inf
    %40 = vmax.xlane.f32.xlu0 %v39
    %v41 = vpop.xlane.xlu0 %40
    %v42 = vsub.f32 %v36, %v41
    %v43 = vmul.f32 %v42, 1.442695
    %v44 = vpow.pop %v43
    %v45 = vsel %vm38, %v44, 0.0
    %46 = vadd.xlane.f32.xlu0 %v45
    %v47 = vpop.xlane.xlu0 %46
    %v48 = vmul.f32 %v44, %v42
    %v49 = vsel %vm38, %v48, 0.0
    %50 = vadd.xlane.f32.xlu0 %v49
    %v51 = vpop.xlane.xlu0 %50
    %v52 = vlog2.pop %v47
    %v53 = vmul.f32 %v52, 0.6931472
    %v54 = vrcp.pop %v47
    %v55 = vmul.f32 %v51, %v54
    %v56 = vsub.f32 %v53, %v55
    %v57 = vmul.f32 %v56, 1.442695
    %v58 = vmul.f32 %v57, %v57
    %vm59 = vcmask 7168
    %v60 = vsel %vm59, %v58, 0.0
    %61 = vadd.xlane.f32.xlu0 %v60
    %v62 = vpop.xlane.xlu0 %61
    %v63 = vrot.slane %v62, 4
    %v64 = vadd.f32 %v62, %v63
    %v65 = vrot.slane %v64, 2
    %v66 = vadd.f32 %v64, %v65
    %v67 = vrot.slane %v66, 1
    %v68 = vadd.f32 %v66, %v67
    %s69 = vtos %v68
    %v70 = vstv %s69
    %v71 = vrsqrt.pop %v70
    %v72 = vmul.f32 %v70, %v71
    %vm73 = vcmp.eq.f32.partialorder %v70, inf
    %v74 = vsel %vm73, %v70, %v72
    %vm75 = vcmp.eq.f32.partialorder %v70, 0.0
    %v76 = vand.u32 %v70, 2147483648
    %v77 = vsel %vm75, %v76, %v74
    %s78 = vtos %v77
    %v79 = vand.u32 2147483647, %v57
    %v80 = vstv %s78
    %v81 = vmul.f32 %v80, %v79
    %v82 = vmax.f32 %v81, 1e-12
    %v83 = vrcp.pop %v82
    %v84 = vmul.f32 %v57, %v83
    %vm85 = vcmask 130048
    %v87 = vsel %vm85, %v37, 0
    %89 = vmatprep.subr.mxu0 0.0
    %90 = vmatpush1.xpose.msra.mxu0 %v87
    %91 = vmatprep.subr.mxu0 0.0
    %92 = vmatpush1.xpose.msra.mxu0 0.0
    %93 = vmatprep.subr.mxu0 0.0
    %94 = vmatpush1.xpose.msra.mxu0 0.0
    %95 = vmatprep.subr.mxu0 0.0
    %96 = vmatpush1.xpose.msra.mxu0 0.0
    %97 = vmatprep.subr.mxu0 0.0
    %98 = vmatpush1.xpose.msra.mxu0 0.0
    %99 = vmatprep.subr.mxu0 0.0
    %100 = vmatpush1.xpose.msra.mxu0 0.0
    %101 = vmatprep.subr.mxu0 0.0
    %102 = vmatpush1.xpose.msra.mxu0 0.0
    %103 = vmatprep.subr.mxu0 0.0
    %104 = vmatpush1.xpose.msra.mxu0 0.0
    %105 = vmatprep.subr.mxu0 0.0
    %106 = vmatpush1.xpose.msra.mxu0 0.0
    %107 = vmatprep.subr.mxu0 0.0
    %108 = vmatpush1.xpose.msra.mxu0 0.0
    %109 = vmatprep.subr.mxu0 0.0
    %110 = vmatpush1.xpose.msra.mxu0 0.0
    %111 = vmatprep.subr.mxu0 0.0
    %112 = vmatpush1.xpose.msra.mxu0 0.0
    %113 = vmatprep.subr.mxu0 0.0
    %114 = vmatpush1.xpose.msra.mxu0 0.0
    %115 = vmatprep.subr.mxu0 0.0
    %116 = vmatpush1.xpose.msra.mxu0 0.0
    %117 = vmatprep.subr.mxu0 0.0
    %118 = vmatpush1.xpose.msra.mxu0 0.0
    %119 = vmatprep.subr.mxu0 0.0
    %120 = vmatpush1.xpose.msra.mxu0 0.0
    %121 = vmatprep.subr.mxu0 0.0
    %122 = vmatpush1.xpose.msra.mxu0 0.0
    %123 = vmatprep.subr.mxu0 0.0
    %124 = vmatpush1.xpose.msra.mxu0 0.0
    %125 = vmatprep.subr.mxu0 0.0
    %126 = vmatpush1.xpose.msra.mxu0 0.0
    %127 = vmatprep.subr.mxu0 0.0
    %128 = vmatpush1.xpose.msra.mxu0 0.0
    %129 = vmatprep.subr.mxu0 0.0
    %130 = vmatpush1.xpose.msra.mxu0 0.0
    %131 = vmatprep.subr.mxu0 0.0
    %132 = vmatpush1.xpose.msra.mxu0 0.0
    %133 = vmatprep.subr.mxu0 0.0
    %134 = vmatpush1.xpose.msra.mxu0 0.0
    %135 = vmatprep.subr.mxu0 0.0
    %136 = vmatpush1.xpose.msra.mxu0 0.0
    %137 = vmatprep.subr.mxu0 0.0
    %138 = vmatpush1.xpose.msra.mxu0 0.0
    %139 = vmatprep.subr.mxu0 0.0
    %140 = vmatpush1.xpose.msra.mxu0 0.0
    %141 = vmatprep.subr.mxu0 0.0
    %142 = vmatpush1.xpose.msra.mxu0 0.0
    %143 = vmatprep.subr.mxu0 0.0
    %144 = vmatpush1.xpose.msra.mxu0 0.0
    %145 = vmatprep.subr.mxu0 0.0
    %146 = vmatpush1.xpose.msra.mxu0 0.0
    %147 = vmatprep.subr.mxu0 0.0
    %148 = vmatpush1.xpose.msra.mxu0 0.0
    %149 = vmatprep.subr.mxu0 0.0
    %150 = vmatpush1.xpose.msra.mxu0 0.0
    %151 = vmatprep.subr.mxu0 0.0
    %152 = vmatpush1.xpose.msra.mxu0 0.0
    %153 = vmatprep.mubr.f32.mxu0 0.0
    %154 = vmatmul.mubr.f32.gmra.mrb[0].mxu0 %v87
    %v155 = vpop.f32.mrb[0].mxu0
    %v156 = vadd.f32 0.0, %v155
    %v157 = vpop.f32.mrb[0].mxu0
    %158 = vdwg.mxu0
    %v159 = vmul.f32 %v156, %v156
    %vm160 = vcmask 64512
    %v161 = vsel %vm160, %v159, 0.0
    %162 = vadd.xlane.f32.xlu0 %v161
    %v163 = vpop.xlane.xlu0 %162
    %v164 = vmax.f32 %v163, 1e-24
    %v165 = vrsqrt.pop %v164
    %v167 = vlaneseq
    %v168 = vand.u32 %v167, 127
    %v169 = vlaneseq
    %v170 = vshrl.u32 %v169, 7
    %v171 = vsub.s32 %v168, %v170
    %v172 = vrot.slane %v165, %v171
    %vm173 = vcmask 1042434
    %v174 = vsel %vm173, %v172, %v172
    %vm175 = vcmask 1043459
    %v176 = vsel %vm175, %v172, %v174
    %vm177 = vcmask 1044484
    %v178 = vsel %vm177, %v172, %v176
    %vm179 = vcmask 1045509
    %v180 = vsel %vm179, %v172, %v178
    %vm181 = vcmask 1046534
    %v182 = vsel %vm181, %v172, %v180
    %vm183 = vcmask 1047559
    %v184 = vsel %vm183, %v172, %v182
    %v186 = vmul.f32 %v156, %v184
    %v188 = vlaneseq
    %v189 = vshrl.u32 %v188, 7
    %v190 = vsub.s32 %v168, %v189
    %v191 = vrot.slane %v84, %v190
    %v192 = vsel %vm173, %v191, %v191
    %v193 = vsel %vm175, %v191, %v192
    %v194 = vsel %vm177, %v191, %v193
    %v195 = vsel %vm179, %v191, %v194
    %v196 = vsel %vm181, %v191, %v195
    %v197 = vsel %vm183, %v191, %v196
    %v199 = vmul.f32 %v57, %v197
    %v200 = vsub.f32 %v199, %v186
    %v201 = vand.u32 2147483647, %v200
    %v202 = vsel %vm160, %v201, 0.0
    %203 = vadd.xlane.f32.xlu0 %v202
    %v204 = vpop.xlane.xlu0 %203
    %v205 = vrot.slane %v204, 4
    %v206 = vadd.f32 %v204, %v205
    %v207 = vrot.slane %v206, 2
    %v208 = vadd.f32 %v206, %v207
    %v209 = vrot.slane %v208, 1
    %v210 = vadd.f32 %v208, %v209
    %s211 = vtos %v210
    %v212 = vrcp.pop 64.0
    %s213 = vtos %v212
    %s214 = smul.f32 %s211, %s213
    %v215 = vstv %s214
    %vm216 = vcmask 0
    %217 = vst.msk [vmem:[#allocation7] sm:$0x1] %vm216, %v215
    // Predicated region
    $region18: #{tpu_custom_call.1} parent=1 // pred_check
      _
    $region19: #{tpu_custom_call.1} parent=1 // pred_check_branch
      %219 = sbr.rel (0) target = $region21
    $region20: #{tpu_custom_call.1} parent=1 // pred_region
      %s221 = ssub.s32 16, 16
      %222 = vsyncadd [#allocation4], %s221
      %s224 = sshll.u32 [#allocation7], 4
      %s225 = int_to_ptr.vmem [resolvable:$true] %s224
      %227 = dma.vmem_to_hbm [thread:$0]  %s225, 16, %s2, [#allocation4]
    $region21: #{tpu_custom_call.1} parent=1 // pred_fallthru
      _
    // Predicated region
    $region22: #{tpu_custom_call.1} parent=1 // pred_check
      _
    $region23: #{tpu_custom_call.1} parent=1 // pred_check_branch
      %229 = sbr.rel (0) target = $region25
    $region24: #{tpu_custom_call.1} parent=1 // pred_region
      %230 = dma.done [#allocation4], 16
    $region25: #{tpu_custom_call.1} parent=1 // pred_fallthru
      _
    %231 = vsyncpa [#allocation3], 1
    %232 = vsyncpa [#allocation6], 1
    %233 = vsyncpa [#allocation4], 1

</llo_original>
